<compile_context>
chip_gen: v7x
topology: tpu7x:2x2x1
jax: 0.10.0
libtpu: 0.0.40
codegen_flags: <defaults>
</compile_context>

<pallas_src>
import functools

import jax
import jax.numpy as jnp
from jax import lax
from jax.experimental import pallas as pl
from jax.experimental.pallas import tpu as pltpu


def _resnet_kernel(x_ref, gamma_ref, beta_ref, wt_ref, b_ref, o_ref,
                   *, num_layers: int, eps: float):
    n, f_pad = x_ref.shape
    x = x_ref[...].astype(jnp.float32)          # (N, Fp)  lane-dense
    w_t = wt_ref[...].astype(jnp.float32)       # (Fp, Fp) == padded W.T

    # Hoist the (1,Fp)->(N,Fp) broadcasts out of the unrolled loop.
    gamma = jnp.broadcast_to(gamma_ref[...].astype(jnp.float32), (n, f_pad))
    beta = jnp.broadcast_to(beta_ref[...].astype(jnp.float32), (n, f_pad))
    b = jnp.broadcast_to(b_ref[...].astype(jnp.float32), (n, f_pad))

    def bn_relu_linear(h):
        # BatchNorm1d (training mode): per-feature stats over the batch axis,
        # biased variance, one-pass formula (clamped at 0 for cancellation).
        mean = jnp.mean(h, axis=0, keepdims=True)
        mean_sq = jnp.mean(h * h, axis=0, keepdims=True)
        var = jnp.maximum(mean_sq - mean * mean, 0.0)
        h = (h - mean) * lax.rsqrt(var + eps) * gamma + beta
        h = jnp.maximum(h, 0.0)                 # relu
        # Linear: y = h @ W.T + b  (W.T pre-transposed + zero-padded outside)
        return jnp.dot(h, w_t, preferred_element_type=jnp.float32) + b

    # num_layers is a compile-time constant: unroll statically so all 2*L
    # matmuls are visible to the scheduler.
    for _ in range(num_layers):
        identity = x
        h = bn_relu_linear(x)
        h = bn_relu_linear(h)
        x = h + identity

    o_ref[...] = x.astype(o_ref.dtype)


def resnet_forward(x, gamma, beta, w, b, *, num_layers: int, eps: float = 1e-5):
    n, f = x.shape
    f_pad = ((f + 127) // 128) * 128            # lane-dense feature dim
    pad = f_pad - f

    # Zero-pad features.  Padded lanes stay exactly 0 through BN (gamma=beta=0
    # there), relu, matmul (padded W rows/cols are 0) and the residual add,
    # so they never leak into real outputs.
    x_p = jnp.pad(x.astype(jnp.float32), ((0, 0), (0, pad)))
    gamma_p = jnp.pad(gamma.astype(jnp.float32), (0, pad)).reshape(1, f_pad)
    beta_p = jnp.pad(beta.astype(jnp.float32), (0, pad)).reshape(1, f_pad)
    b_p = jnp.pad(b.astype(jnp.float32), (0, pad)).reshape(1, f_pad)
    w_t_p = jnp.pad(w.astype(jnp.float32).T, ((0, pad), (0, pad)))  # (Fp, Fp)

    kernel = functools.partial(_resnet_kernel, num_layers=num_layers, eps=eps)
    vmem = pl.BlockSpec(memory_space=pltpu.MemorySpace.VMEM)

    cost = pl.CostEstimate(
        flops=num_layers * 2 * (2 * n * f_pad * f_pad + 8 * n * f_pad),
        transcendentals=num_layers * 2 * f_pad,
        bytes_accessed=4 * (2 * n * f_pad + f_pad * f_pad + 3 * f_pad),
    )

    out_p = pl.pallas_call(
        kernel,
        out_shape=jax.ShapeDtypeStruct((n, f_pad), jnp.float32),
        in_specs=[vmem, vmem, vmem, vmem, vmem],
        out_specs=vmem,
        input_output_aliases={0: 0},            # out reuses padded-x HBM buffer
        cost_estimate=cost,
        compiler_params=pltpu.CompilerParams(
            vmem_limit_bytes=32 * 1024 * 1024,  # safe budget on v7x (64 MiB phys)
        ),
    )(x_p, gamma_p, beta_p, w_t_p, b_p)

    return out_p[:, :f]                         # drop padded lanes


def resnet_reference(x, gamma, beta, w, b, *, num_layers: int, eps: float = 1e-5):
    x = x.astype(jnp.float32)

    def bn_relu_linear(h):
        mean = jnp.mean(h, axis=0, keepdims=True)
        var = jnp.mean((h - mean) ** 2, axis=0, keepdims=True)
        h = (h - mean) / jnp.sqrt(var + eps) * gamma + beta
        h = jnp.maximum(h, 0.0)
        return h @ w.T + b

    for _ in range(num_layers):
        identity = x
        x = bn_relu_linear(x)
        x = bn_relu_linear(x)
        x = x + identity
    return x


if __name__ == "__main__":
    size = 32          # feature dim of BatchNorm1d / Linear
    batch = 8
    num_layers = 3

    key = jax.random.PRNGKey(0)
    kx, kw, kb = jax.random.split(key, 3)

    x = jax.random.normal(kx, (batch, size), dtype=jnp.float32)

    # Deterministic parameter init (PyTorch-like):
    #  BatchNorm1d: gamma=1, beta=0
    #  Linear: W, b ~ U(-1/sqrt(size), 1/sqrt(size))
    gamma = jnp.ones((size,), jnp.float32)
    beta = jnp.zeros((size,), jnp.float32)
    bound = 1.0 / jnp.sqrt(jnp.float32(size))
    w = jax.random.uniform(kw, (size, size), jnp.float32, -bound, bound)
    b = jax.random.uniform(kb, (size,), jnp.float32, -bound, bound)

    out = resnet_forward(x, gamma, beta, w, b, num_layers=num_layers)
    out = jax.block_until_ready(out)

    ref = resnet_reference(x, gamma, beta, w, b, num_layers=num_layers)
    assert out.shape == (batch, size)
    assert jnp.allclose(out, ref, atol=1e-4, rtol=1e-4), "mismatch vs reference"

    print("KERNEL_OK")
</pallas_src>

<mosaic_0001>
module attributes {stable_mosaic.version = 11 : i64} {
  func.func @_resnet_kernel(%arg0: memref<8x128xf32, #tpu.memory_space<vmem>>, %arg1: memref<1x128xf32, #tpu.memory_space<vmem>>, %arg2: memref<1x128xf32, #tpu.memory_space<vmem>>, %arg3: memref<128x128xf32, #tpu.memory_space<vmem>>, %arg4: memref<1x128xf32, #tpu.memory_space<vmem>>, %arg5: memref<8x128xf32, #tpu.memory_space<vmem>>) attributes {dimension_semantics = [], scalar_prefetch = 0 : i64, scratch_operands = 0 : i64, tpu.core_type = #tpu.core_type<tc>} {
    %c0 = arith.constant 0 : index
    %c0_0 = arith.constant 0 : index
    %0 = vector.load %arg0[%c0, %c0_0] : memref<8x128xf32, #tpu.memory_space<vmem>>, vector<8x128xf32>
    %c0_1 = arith.constant 0 : index
    %c0_2 = arith.constant 0 : index
    %1 = vector.load %arg3[%c0_1, %c0_2] : memref<128x128xf32, #tpu.memory_space<vmem>>, vector<128x128xf32>
    %c0_3 = arith.constant 0 : index
    %c0_4 = arith.constant 0 : index
    %2 = vector.load %arg1[%c0_3, %c0_4] : memref<1x128xf32, #tpu.memory_space<vmem>>, vector<1x128xf32>
    %3 = vector.shape_cast %2 : vector<1x128xf32> to vector<1x128xf32>
    %4 = vector.broadcast %3 : vector<1x128xf32> to vector<8x128xf32>
    %c0_5 = arith.constant 0 : index
    %c0_6 = arith.constant 0 : index
    %5 = vector.load %arg2[%c0_5, %c0_6] : memref<1x128xf32, #tpu.memory_space<vmem>>, vector<1x128xf32>
    %6 = vector.shape_cast %5 : vector<1x128xf32> to vector<1x128xf32>
    %7 = vector.broadcast %6 : vector<1x128xf32> to vector<8x128xf32>
    %c0_7 = arith.constant 0 : index
    %c0_8 = arith.constant 0 : index
    %8 = vector.load %arg4[%c0_7, %c0_8] : memref<1x128xf32, #tpu.memory_space<vmem>>, vector<1x128xf32>
    %9 = vector.shape_cast %8 : vector<1x128xf32> to vector<1x128xf32>
    %10 = vector.broadcast %9 : vector<1x128xf32> to vector<8x128xf32>
    %cst = arith.constant dense<0.000000e+00> : vector<128xf32>
    %11 = vector.multi_reduction <add>, %0, %cst [0] : vector<8x128xf32> to vector<128xf32>
    %12 = vector.shape_cast %11 : vector<128xf32> to vector<1x128xf32>
    %cst_9 = arith.constant 8.000000e+00 : f32
    %13 = vector.broadcast %cst_9 : f32 to vector<1x128xf32>
    %14 = arith.divf %12, %13 : vector<1x128xf32>
    %15 = arith.mulf %0, %0 : vector<8x128xf32>
    %cst_10 = arith.constant dense<0.000000e+00> : vector<128xf32>
    %16 = vector.multi_reduction <add>, %15, %cst_10 [0] : vector<8x128xf32> to vector<128xf32>
    %17 = vector.shape_cast %16 : vector<128xf32> to vector<1x128xf32>
    %cst_11 = arith.constant 8.000000e+00 : f32
    %18 = vector.broadcast %cst_11 : f32 to vector<1x128xf32>
    %19 = arith.divf %17, %18 : vector<1x128xf32>
    %20 = arith.mulf %14, %14 : vector<1x128xf32>
    %21 = arith.subf %19, %20 : vector<1x128xf32>
    %cst_12 = arith.constant 0.000000e+00 : f32
    %22 = vector.broadcast %cst_12 : f32 to vector<1x128xf32>
    %23 = arith.maximumf %21, %22 : vector<1x128xf32>
    %24 = vector.broadcast %14 : vector<1x128xf32> to vector<8x128xf32>
    %25 = arith.subf %0, %24 : vector<8x128xf32>
    %cst_13 = arith.constant 9.99999974E-6 : f32
    %26 = vector.broadcast %cst_13 : f32 to vector<1x128xf32>
    %27 = arith.addf %23, %26 : vector<1x128xf32>
    %28 = math.rsqrt %27 : vector<1x128xf32>
    %29 = vector.broadcast %28 : vector<1x128xf32> to vector<8x128xf32>
    %30 = arith.mulf %25, %29 : vector<8x128xf32>
    %31 = arith.mulf %30, %4 : vector<8x128xf32>
    %32 = arith.addf %31, %7 : vector<8x128xf32>
    %cst_14 = arith.constant 0.000000e+00 : f32
    %33 = vector.broadcast %cst_14 : f32 to vector<8x128xf32>
    %34 = arith.maximumf %32, %33 : vector<8x128xf32>
    %cst_15 = arith.constant dense<0.000000e+00> : vector<8x128xf32>
    %35 = tpu.matmul %34, %1, %cst_15 {dimension_numbers = #tpu.dot_dimension_numbers<[1], [0], [0], [1], [0, 0, 1, 1], [], []>} : vector<8x128xf32>, vector<128x128xf32>, vector<8x128xf32> -> vector<8x128xf32>
    %36 = arith.addf %35, %10 : vector<8x128xf32>
    %cst_16 = arith.constant dense<0.000000e+00> : vector<128xf32>
    %37 = vector.multi_reduction <add>, %36, %cst_16 [0] : vector<8x128xf32> to vector<128xf32>
    %38 = vector.shape_cast %37 : vector<128xf32> to vector<1x128xf32>
    %cst_17 = arith.constant 8.000000e+00 : f32
    %39 = vector.broadcast %cst_17 : f32 to vector<1x128xf32>
    %40 = arith.divf %38, %39 : vector<1x128xf32>
    %41 = arith.mulf %36, %36 : vector<8x128xf32>
    %cst_18 = arith.constant dense<0.000000e+00> : vector<128xf32>
    %42 = vector.multi_reduction <add>, %41, %cst_18 [0] : vector<8x128xf32> to vector<128xf32>
    %43 = vector.shape_cast %42 : vector<128xf32> to vector<1x128xf32>
    %cst_19 = arith.constant 8.000000e+00 : f32
    %44 = vector.broadcast %cst_19 : f32 to vector<1x128xf32>
    %45 = arith.divf %43, %44 : vector<1x128xf32>
    %46 = arith.mulf %40, %40 : vector<1x128xf32>
    %47 = arith.subf %45, %46 : vector<1x128xf32>
    %cst_20 = arith.constant 0.000000e+00 : f32
    %48 = vector.broadcast %cst_20 : f32 to vector<1x128xf32>
    %49 = arith.maximumf %47, %48 : vector<1x128xf32>
    %50 = vector.broadcast %40 : vector<1x128xf32> to vector<8x128xf32>
    %51 = arith.subf %36, %50 : vector<8x128xf32>
    %cst_21 = arith.constant 9.99999974E-6 : f32
    %52 = vector.broadcast %cst_21 : f32 to vector<1x128xf32>
    %53 = arith.addf %49, %52 : vector<1x128xf32>
    %54 = math.rsqrt %53 : vector<1x128xf32>
    %55 = vector.broadcast %54 : vector<1x128xf32> to vector<8x128xf32>
    %56 = arith.mulf %51, %55 : vector<8x128xf32>
    %57 = arith.mulf %56, %4 : vector<8x128xf32>
    %58 = arith.addf %57, %7 : vector<8x128xf32>
    %cst_22 = arith.constant 0.000000e+00 : f32
    %59 = vector.broadcast %cst_22 : f32 to vector<8x128xf32>
    %60 = arith.maximumf %58, %59 : vector<8x128xf32>
    %cst_23 = arith.constant dense<0.000000e+00> : vector<8x128xf32>
    %61 = tpu.matmul %60, %1, %cst_23 {dimension_numbers = #tpu.dot_dimension_numbers<[1], [0], [0], [1], [0, 0, 1, 1], [], []>} : vector<8x128xf32>, vector<128x128xf32>, vector<8x128xf32> -> vector<8x128xf32>
    %62 = arith.addf %61, %10 : vector<8x128xf32>
    %63 = arith.addf %62, %0 : vector<8x128xf32>
    %cst_24 = arith.constant dense<0.000000e+00> : vector<128xf32>
    %64 = vector.multi_reduction <add>, %63, %cst_24 [0] : vector<8x128xf32> to vector<128xf32>
    %65 = vector.shape_cast %64 : vector<128xf32> to vector<1x128xf32>
    %cst_25 = arith.constant 8.000000e+00 : f32
    %66 = vector.broadcast %cst_25 : f32 to vector<1x128xf32>
    %67 = arith.divf %65, %66 : vector<1x128xf32>
    %68 = arith.mulf %63, %63 : vector<8x128xf32>
    %cst_26 = arith.constant dense<0.000000e+00> : vector<128xf32>
    %69 = vector.multi_reduction <add>, %68, %cst_26 [0] : vector<8x128xf32> to vector<128xf32>
    %70 = vector.shape_cast %69 : vector<128xf32> to vector<1x128xf32>
    %cst_27 = arith.constant 8.000000e+00 : f32
    %71 = vector.broadcast %cst_27 : f32 to vector<1x128xf32>
    %72 = arith.divf %70, %71 : vector<1x128xf32>
    %73 = arith.mulf %67, %67 : vector<1x128xf32>
    %74 = arith.subf %72, %73 : vector<1x128xf32>
    %cst_28 = arith.constant 0.000000e+00 : f32
    %75 = vector.broadcast %cst_28 : f32 to vector<1x128xf32>
    %76 = arith.maximumf %74, %75 : vector<1x128xf32>
    %77 = vector.broadcast %67 : vector<1x128xf32> to vector<8x128xf32>
    %78 = arith.subf %63, %77 : vector<8x128xf32>
    %cst_29 = arith.constant 9.99999974E-6 : f32
    %79 = vector.broadcast %cst_29 : f32 to vector<1x128xf32>
    %80 = arith.addf %76, %79 : vector<1x128xf32>
    %81 = math.rsqrt %80 : vector<1x128xf32>
    %82 = vector.broadcast %81 : vector<1x128xf32> to vector<8x128xf32>
    %83 = arith.mulf %78, %82 : vector<8x128xf32>
    %84 = arith.mulf %83, %4 : vector<8x128xf32>
    %85 = arith.addf %84, %7 : vector<8x128xf32>
    %cst_30 = arith.constant 0.000000e+00 : f32
    %86 = vector.broadcast %cst_30 : f32 to vector<8x128xf32>
    %87 = arith.maximumf %85, %86 : vector<8x128xf32>
    %cst_31 = arith.constant dense<0.000000e+00> : vector<8x128xf32>
    %88 = tpu.matmul %87, %1, %cst_31 {dimension_numbers = #tpu.dot_dimension_numbers<[1], [0], [0], [1], [0, 0, 1, 1], [], []>} : vector<8x128xf32>, vector<128x128xf32>, vector<8x128xf32> -> vector<8x128xf32>
    %89 = arith.addf %88, %10 : vector<8x128xf32>
    %cst_32 = arith.constant dense<0.000000e+00> : vector<128xf32>
    %90 = vector.multi_reduction <add>, %89, %cst_32 [0] : vector<8x128xf32> to vector<128xf32>
    %91 = vector.shape_cast %90 : vector<128xf32> to vector<1x128xf32>
    %cst_33 = arith.constant 8.000000e+00 : f32
    %92 = vector.broadcast %cst_33 : f32 to vector<1x128xf32>
    %93 = arith.divf %91, %92 : vector<1x128xf32>
    %94 = arith.mulf %89, %89 : vector<8x128xf32>
    %cst_34 = arith.constant dense<0.000000e+00> : vector<128xf32>
    %95 = vector.multi_reduction <add>, %94, %cst_34 [0] : vector<8x128xf32> to vector<128xf32>
    %96 = vector.shape_cast %95 : vector<128xf32> to vector<1x128xf32>
    %cst_35 = arith.constant 8.000000e+00 : f32
    %97 = vector.broadcast %cst_35 : f32 to vector<1x128xf32>
    %98 = arith.divf %96, %97 : vector<1x128xf32>
    %99 = arith.mulf %93, %93 : vector<1x128xf32>
    %100 = arith.subf %98, %99 : vector<1x128xf32>
    %cst_36 = arith.constant 0.000000e+00 : f32
    %101 = vector.broadcast %cst_36 : f32 to vector<1x128xf32>
    %102 = arith.maximumf %100, %101 : vector<1x128xf32>
    %103 = vector.broadcast %93 : vector<1x128xf32> to vector<8x128xf32>
    %104 = arith.subf %89, %103 : vector<8x128xf32>
    %cst_37 = arith.constant 9.99999974E-6 : f32
    %105 = vector.broadcast %cst_37 : f32 to vector<1x128xf32>
    %106 = arith.addf %102, %105 : vector<1x128xf32>
    %107 = math.rsqrt %106 : vector<1x128xf32>
    %108 = vector.broadcast %107 : vector<1x128xf32> to vector<8x128xf32>
    %109 = arith.mulf %104, %108 : vector<8x128xf32>
    %110 = arith.mulf %109, %4 : vector<8x128xf32>
    %111 = arith.addf %110, %7 : vector<8x128xf32>
    %cst_38 = arith.constant 0.000000e+00 : f32
    %112 = vector.broadcast %cst_38 : f32 to vector<8x128xf32>
    %113 = arith.maximumf %111, %112 : vector<8x128xf32>
    %cst_39 = arith.constant dense<0.000000e+00> : vector<8x128xf32>
    %114 = tpu.matmul %113, %1, %cst_39 {dimension_numbers = #tpu.dot_dimension_numbers<[1], [0], [0], [1], [0, 0, 1, 1], [], []>} : vector<8x128xf32>, vector<128x128xf32>, vector<8x128xf32> -> vector<8x128xf32>
    %115 = arith.addf %114, %10 : vector<8x128xf32>
    %116 = arith.addf %115, %63 : vector<8x128xf32>
    %cst_40 = arith.constant dense<0.000000e+00> : vector<128xf32>
    %117 = vector.multi_reduction <add>, %116, %cst_40 [0] : vector<8x128xf32> to vector<128xf32>
    %118 = vector.shape_cast %117 : vector<128xf32> to vector<1x128xf32>
    %cst_41 = arith.constant 8.000000e+00 : f32
    %119 = vector.broadcast %cst_41 : f32 to vector<1x128xf32>
    %120 = arith.divf %118, %119 : vector<1x128xf32>
    %121 = arith.mulf %116, %116 : vector<8x128xf32>
    %cst_42 = arith.constant dense<0.000000e+00> : vector<128xf32>
    %122 = vector.multi_reduction <add>, %121, %cst_42 [0] : vector<8x128xf32> to vector<128xf32>
    %123 = vector.shape_cast %122 : vector<128xf32> to vector<1x128xf32>
    %cst_43 = arith.constant 8.000000e+00 : f32
    %124 = vector.broadcast %cst_43 : f32 to vector<1x128xf32>
    %125 = arith.divf %123, %124 : vector<1x128xf32>
    %126 = arith.mulf %120, %120 : vector<1x128xf32>
    %127 = arith.subf %125, %126 : vector<1x128xf32>
    %cst_44 = arith.constant 0.000000e+00 : f32
    %128 = vector.broadcast %cst_44 : f32 to vector<1x128xf32>
    %129 = arith.maximumf %127, %128 : vector<1x128xf32>
    %130 = vector.broadcast %120 : vector<1x128xf32> to vector<8x128xf32>
    %131 = arith.subf %116, %130 : vector<8x128xf32>
    %cst_45 = arith.constant 9.99999974E-6 : f32
    %132 = vector.broadcast %cst_45 : f32 to vector<1x128xf32>
    %133 = arith.addf %129, %132 : vector<1x128xf32>
    %134 = math.rsqrt %133 : vector<1x128xf32>
    %135 = vector.broadcast %134 : vector<1x128xf32> to vector<8x128xf32>
    %136 = arith.mulf %131, %135 : vector<8x128xf32>
    %137 = arith.mulf %136, %4 : vector<8x128xf32>
    %138 = arith.addf %137, %7 : vector<8x128xf32>
    %cst_46 = arith.constant 0.000000e+00 : f32
    %139 = vector.broadcast %cst_46 : f32 to vector<8x128xf32>
    %140 = arith.maximumf %138, %139 : vector<8x128xf32>
    %cst_47 = arith.constant dense<0.000000e+00> : vector<8x128xf32>
    %141 = tpu.matmul %140, %1, %cst_47 {dimension_numbers = #tpu.dot_dimension_numbers<[1], [0], [0], [1], [0, 0, 1, 1], [], []>} : vector<8x128xf32>, vector<128x128xf32>, vector<8x128xf32> -> vector<8x128xf32>
    %142 = arith.addf %141, %10 : vector<8x128xf32>
    %cst_48 = arith.constant dense<0.000000e+00> : vector<128xf32>
    %143 = vector.multi_reduction <add>, %142, %cst_48 [0] : vector<8x128xf32> to vector<128xf32>
    %144 = vector.shape_cast %143 : vector<128xf32> to vector<1x128xf32>
    %cst_49 = arith.constant 8.000000e+00 : f32
    %145 = vector.broadcast %cst_49 : f32 to vector<1x128xf32>
    %146 = arith.divf %144, %145 : vector<1x128xf32>
    %147 = arith.mulf %142, %142 : vector<8x128xf32>
    %cst_50 = arith.constant dense<0.000000e+00> : vector<128xf32>
    %148 = vector.multi_reduction <add>, %147, %cst_50 [0] : vector<8x128xf32> to vector<128xf32>
    %149 = vector.shape_cast %148 : vector<128xf32> to vector<1x128xf32>
    %cst_51 = arith.constant 8.000000e+00 : f32
    %150 = vector.broadcast %cst_51 : f32 to vector<1x128xf32>
    %151 = arith.divf %149, %150 : vector<1x128xf32>
    %152 = arith.mulf %146, %146 : vector<1x128xf32>
    %153 = arith.subf %151, %152 : vector<1x128xf32>
    %cst_52 = arith.constant 0.000000e+00 : f32
    %154 = vector.broadcast %cst_52 : f32 to vector<1x128xf32>
    %155 = arith.maximumf %153, %154 : vector<1x128xf32>
    %156 = vector.broadcast %146 : vector<1x128xf32> to vector<8x128xf32>
    %157 = arith.subf %142, %156 : vector<8x128xf32>
    %cst_53 = arith.constant 9.99999974E-6 : f32
    %158 = vector.broadcast %cst_53 : f32 to vector<1x128xf32>
    %159 = arith.addf %155, %158 : vector<1x128xf32>
    %160 = math.rsqrt %159 : vector<1x128xf32>
    %161 = vector.broadcast %160 : vector<1x128xf32> to vector<8x128xf32>
    %162 = arith.mulf %157, %161 : vector<8x128xf32>
    %163 = arith.mulf %162, %4 : vector<8x128xf32>
    %164 = arith.addf %163, %7 : vector<8x128xf32>
    %cst_54 = arith.constant 0.000000e+00 : f32
    %165 = vector.broadcast %cst_54 : f32 to vector<8x128xf32>
    %166 = arith.maximumf %164, %165 : vector<8x128xf32>
    %cst_55 = arith.constant dense<0.000000e+00> : vector<8x128xf32>
    %167 = tpu.matmul %166, %1, %cst_55 {dimension_numbers = #tpu.dot_dimension_numbers<[1], [0], [0], [1], [0, 0, 1, 1], [], []>} : vector<8x128xf32>, vector<128x128xf32>, vector<8x128xf32> -> vector<8x128xf32>
    %168 = arith.addf %167, %10 : vector<8x128xf32>
    %169 = arith.addf %168, %116 : vector<8x128xf32>
    %c0_56 = arith.constant 0 : index
    %c0_57 = arith.constant 0 : index
    %170 = vector.load %arg5[%c0_56, %c0_57] : memref<8x128xf32, #tpu.memory_space<vmem>>, vector<8x128xf32>
    tpu.vector_store %arg5[%c0_56, %c0_57], %169 {strides = array<i32>} : memref<8x128xf32, #tpu.memory_space<vmem>>, vector<8x128xf32>,
    return
  }
}

</mosaic_0001>

<llo_original>
// kernel: tpu_custom_call.1
$region0: #{tpu_custom_call.1}
  #allocation0 [shape = 'u32[]', space=smem, size = 0x4, offset = 0x4, fixed_abs, tag = 'smem constant byte address 0x4 - core index']
  #allocation1 [shape = 'u32[144,128]{1,0:T(1,128)}', space=vmem, size = 0x12000, scoped, tag = 'internal scratch']
  %s0 = inlined_call_operand.hbm [shape: f32[8,128], index: 0, kind: input, shape index: {}, may-alias: {0,5}]
  %s1 = inlined_call_operand.vmem [shape: f32[1,128], index: 1, kind: input, shape index: {}]
  %s2 = inlined_call_operand.vmem [shape: f32[1,128], index: 2, kind: input, shape index: {}]
  %s3 = inlined_call_operand.hbm [shape: f32[128,128], index: 3, kind: input, shape index: {}]
  %s4 = inlined_call_operand.vmem [shape: f32[1,128], index: 4, kind: input, shape index: {}]
  %s5 = inlined_call_operand.hbm [shape: f32[8,128], index: 5, kind: output, shape index: {}, may-alias: {0,5}]
  %s6 = sld [smem:[#allocation0]]
  $region38: #{tpu_custom_call.1} parent=0
    _
  %s8 = ssub.s32 1, %s6
  %s9 = scalar_select 0, %s8, %s6
  $region1: #{tpu_custom_call.1} parent=0
    #allocation2 [shape = 'u8[4096]{0}', space=vmem, size = 0x1000, scoped, tag = 'input window, operand 0, single buffered']
    #allocation3 [shape = 's32[1]{0}', space=sflag, size = 0x4, scoped, tag = 'scoped memory for tpu_custom_call.1']
    #allocation4 [shape = 's32[1]{0}', space=sflag, size = 0x4, scoped, tag = 'scoped memory for tpu_custom_call.1']
    #allocation5 [shape = 'u8[65536]{0}', space=vmem, size = 0x10000, scoped, tag = 'input window, operand 3, single buffered']
    #allocation6 [shape = 's32[1]{0}', space=sflag, size = 0x4, scoped, tag = 'scoped memory for tpu_custom_call.1']
    #allocation7 [shape = 'u8[4096]{0}', space=vmem, size = 0x1000, scoped, tag = 'output window, operand 0, single buffered']
    %10 = vsyncpa [#allocation3], 0
    %11 = vsyncpa [#allocation6], 0
    %12 = vsyncpa [#allocation4], 0
    // Predicated region
    $region2: #{tpu_custom_call.1} parent=1 // pred_check
      _
    $region3: #{tpu_custom_call.1} parent=1 // pred_check_branch
      %14 = sbr.rel (0) target = $region5
    $region4: #{tpu_custom_call.1} parent=1 // pred_region
      %s16 = ssub.s32 128, 128
      %17 = vsyncadd [#allocation3], %s16
      %s19 = sshll.u32 [#allocation2], 4
      %s20 = int_to_ptr.vmem [resolvable:$true] %s19
      %22 = dma.hbm_to_vmem [thread:$0]  %s0, 128, %s20, [#allocation3]
    $region5: #{tpu_custom_call.1} parent=1 // pred_fallthru
      _
    // Predicated region
    $region6: #{tpu_custom_call.1} parent=1 // pred_check
      _
    $region7: #{tpu_custom_call.1} parent=1 // pred_check_branch
      %24 = sbr.rel (0) target = $region9
    $region8: #{tpu_custom_call.1} parent=1 // pred_region
      _
    $region9: #{tpu_custom_call.1} parent=1 // pred_fallthru
      _
    // Predicated region
    $region10: #{tpu_custom_call.1} parent=1 // pred_check
      _
    $region11: #{tpu_custom_call.1} parent=1 // pred_check_branch
      %26 = sbr.rel (0) target = $region13
    $region12: #{tpu_custom_call.1} parent=1 // pred_region
      _
    $region13: #{tpu_custom_call.1} parent=1 // pred_fallthru
      _
    // Predicated region
    $region14: #{tpu_custom_call.1} parent=1 // pred_check
      _
    $region15: #{tpu_custom_call.1} parent=1 // pred_check_branch
      %28 = sbr.rel (0) target = $region17
    $region16: #{tpu_custom_call.1} parent=1 // pred_region
      %s30 = ssub.s32 2048, 2048
      %31 = vsyncadd [#allocation6], %s30
      %s32 = sshll.u32 [#allocation5], 4
      %s33 = int_to_ptr.vmem [resolvable:$true] %s32
      %38 = dma.hbm_to_vmem [thread:$0]  %s3, 2048, %s33, [#allocation6], 128, 128, 8
    $region17: #{tpu_custom_call.1} parent=1 // pred_fallthru
      _
    // Predicated region
    $region18: #{tpu_custom_call.1} parent=1 // pred_check
      _
    $region19: #{tpu_custom_call.1} parent=1 // pred_check_branch
      %40 = sbr.rel (0) target = $region21
    $region20: #{tpu_custom_call.1} parent=1 // pred_region
      _
    $region21: #{tpu_custom_call.1} parent=1 // pred_fallthru
      _
    // Predicated region
    $region22: #{tpu_custom_call.1} parent=1 // pred_check
      _
    $region23: #{tpu_custom_call.1} parent=1 // pred_check_branch
      %42 = sbr.rel (0) target = $region25
    $region24: #{tpu_custom_call.1} parent=1 // pred_region
      %43 = dma.done [#allocation3], 128
    $region25: #{tpu_custom_call.1} parent=1 // pred_fallthru
      _
    // Predicated region
    $region26: #{tpu_custom_call.1} parent=1 // pred_check
      _
    $region27: #{tpu_custom_call.1} parent=1 // pred_check_branch
      %45 = sbr.rel (0) target = $region29
    $region28: #{tpu_custom_call.1} parent=1 // pred_region
      %46 = dma.done [#allocation6], 2048
    $region29: #{tpu_custom_call.1} parent=1 // pred_fallthru
      _
    %v47 = vld [vmem:[#allocation2] sm:$0xff]
    %v48 = vld [vmem:[#allocation5] sm:$0xff]
    %v49 = vld [vmem:[#allocation5 + $0x8] sm:$0xff]
    %v50 = vld [vmem:[#allocation5 + $0x10] sm:$0xff]
    %v51 = vld [vmem:[#allocation5 + $0x18] sm:$0xff]
    %v52 = vld [vmem:[#allocation5 + $0x20] sm:$0xff]
    %v53 = vld [vmem:[#allocation5 + $0x28] sm:$0xff]
    %v54 = vld [vmem:[#allocation5 + $0x30] sm:$0xff]
    %v55 = vld [vmem:[#allocation5 + $0x38] sm:$0xff]
    %v56 = vld [vmem:[#allocation5 + $0x40] sm:$0xff]
    %v57 = vld [vmem:[#allocation5 + $0x48] sm:$0xff]
    %v58 = vld [vmem:[#allocation5 + $0x50] sm:$0xff]
    %v59 = vld [vmem:[#allocation5 + $0x58] sm:$0xff]
    %v60 = vld [vmem:[#allocation5 + $0x60] sm:$0xff]
    %v61 = vld [vmem:[#allocation5 + $0x68] sm:$0xff]
    %v62 = vld [vmem:[#allocation5 + $0x70] sm:$0xff]
    %v63 = vld [vmem:[#allocation5 + $0x78] sm:$0xff]
    %v64 = vld [vmem:[%s1] sm:$0x1]
    %v66 = vlaneseq
    %v67 = vshrl.u32 %v66, 7
    %v68 = vsub.s32 0, %v67
    %v69 = vrot.slane %v64, %v68
    %v71 = vld [vmem:[%s2] sm:$0x1]
    %v73 = vlaneseq
    %v74 = vshrl.u32 %v73, 7
    %v75 = vsub.s32 0, %v74
    %v76 = vrot.slane %v71, %v75
    %v78 = vld [vmem:[%s4] sm:$0x1]
    %v80 = vlaneseq
    %v81 = vshrl.u32 %v80, 7
    %v82 = vsub.s32 0, %v81
    %v83 = vrot.slane %v78, %v82
    %v85 = vrot.slane %v47, 4
    %v86 = vadd.f32 %v47, %v85
    %v87 = vrot.slane %v86, 2
    %v88 = vadd.f32 %v86, %v87
    %v89 = vrot.slane %v88, 1
    %v90 = vadd.f32 %v88, %v89
    %v91 = vrcp.pop 8.0
    %v92 = vmul.f32 %v90, %v91
    %v93 = vmul.f32 %v47, %v47
    %v94 = vrot.slane %v93, 4
    %v95 = vadd.f32 %v93, %v94
    %v96 = vrot.slane %v95, 2
    %v97 = vadd.f32 %v95, %v96
    %v98 = vrot.slane %v97, 1
    %v99 = vadd.f32 %v97, %v98
    %v100 = vmul.f32 %v99, %v91
    %v101 = vmul.f32 %v92, %v92
    %v102 = vsub.f32 %v100, %v101
    %v103 = vmax.f32 %v102, 0.0
    %v104 = vsub.f32 %v47, %v92
    %v105 = vadd.f32 %v103, 1e-05
    %v106 = vrsqrt.pop %v105
    %v107 = vmul.f32 %v104, %v106
    %v108 = vmul.f32 %v107, %v69
    %v109 = vadd.f32 %v108, %v76
    %v110 = vmax.f32 %v109, 0.0
    %111 = vmatprep.subr.mxu0 0.0
    %112 = vmatpush1.msra.mxu0 %v48
    %113 = vmatprep.subr.mxu0 0.0
    %114 = vmatpush1.msra.mxu0 %v49
    %115 = vmatprep.subr.mxu0 0.0
    %116 = vmatpush1.msra.mxu0 %v50
    %117 = vmatprep.subr.mxu0 0.0
    %118 = vmatpush1.msra.mxu0 %v51
    %119 = vmatprep.subr.mxu0 0.0
    %120 = vmatpush1.msra.mxu0 %v52
    %121 = vmatprep.subr.mxu0 0.0
    %122 = vmatpush1.msra.mxu0 %v53
    %123 = vmatprep.subr.mxu0 0.0
    %124 = vmatpush1.msra.mxu0 %v54
    %125 = vmatprep.subr.mxu0 0.0
    %126 = vmatpush1.msra.mxu0 %v55
    %127 = vmatprep.subr.mxu0 0.0
    %128 = vmatpush1.msra.mxu0 %v56
    %129 = vmatprep.subr.mxu0 0.0
    %130 = vmatpush1.msra.mxu0 %v57
    %131 = vmatprep.subr.mxu0 0.0
    %132 = vmatpush1.msra.mxu0 %v58
    %133 = vmatprep.subr.mxu0 0.0
    %134 = vmatpush1.msra.mxu0 %v59
    %135 = vmatprep.subr.mxu0 0.0
    %136 = vmatpush1.msra.mxu0 %v60
    %137 = vmatprep.subr.mxu0 0.0
    %138 = vmatpush1.msra.mxu0 %v61
    %139 = vmatprep.subr.mxu0 0.0
    %140 = vmatpush1.msra.mxu0 %v62
    %141 = vmatprep.subr.mxu0 0.0
    %142 = vmatpush1.msra.mxu0 %v63
    %143 = vmatprep.subr.mxu0 0.0
    %144 = vmatpush1.msra.mxu0 0.0
    %145 = vmatprep.subr.mxu0 0.0
    %146 = vmatpush1.msra.mxu0 0.0
    %147 = vmatprep.subr.mxu0 0.0
    %148 = vmatpush1.msra.mxu0 0.0
    %149 = vmatprep.subr.mxu0 0.0
    %150 = vmatpush1.msra.mxu0 0.0
    %151 = vmatprep.subr.mxu0 0.0
    %152 = vmatpush1.msra.mxu0 0.0
    %153 = vmatprep.subr.mxu0 0.0
    %154 = vmatpush1.msra.mxu0 0.0
    %155 = vmatprep.subr.mxu0 0.0
    %156 = vmatpush1.msra.mxu0 0.0
    %157 = vmatprep.subr.mxu0 0.0
    %158 = vmatpush1.msra.mxu0 0.0
    %159 = vmatprep.subr.mxu0 0.0
    %160 = vmatpush1.msra.mxu0 0.0
    %161 = vmatprep.subr.mxu0 0.0
    %162 = vmatpush1.msra.mxu0 0.0
    %163 = vmatprep.subr.mxu0 0.0
    %164 = vmatpush1.msra.mxu0 0.0
    %165 = vmatprep.subr.mxu0 0.0
    %166 = vmatpush1.msra.mxu0 0.0
    %167 = vmatprep.subr.mxu0 0.0
    %168 = vmatpush1.msra.mxu0 0.0
    %169 = vmatprep.subr.mxu0 0.0
    %170 = vmatpush1.msra.mxu0 0.0
    %171 = vmatprep.subr.mxu0 0.0
    %172 = vmatpush1.msra.mxu0 0.0
    %173 = vmatprep.subr.mxu0 0.0
    %174 = vmatpush1.msra.mxu0 0.0
    %175 = vmatprep.mubr.f32.mxu0 0.0
    %176 = vmatmul.mubr.f32.gmra.mrb[0].mxu0 %v110
    %v177 = vpop.f32.mrb[0].mxu0
    %v178 = vadd.f32 %v83, %v177
    %v179 = vpop.f32.mrb[0].mxu0
    %180 = vdwg.mxu0
    %v181 = vrot.slane %v178, 4
    %v182 = vadd.f32 %v178, %v181
    %v183 = vrot.slane %v182, 2
    %v184 = vadd.f32 %v182, %v183
    %v185 = vrot.slane %v184, 1
    %v186 = vadd.f32 %v184, %v185
    %v187 = vmul.f32 %v186, %v91
    %v188 = vmul.f32 %v178, %v178
    %v189 = vrot.slane %v188, 4
    %v190 = vadd.f32 %v188, %v189
    %v191 = vrot.slane %v190, 2
    %v192 = vadd.f32 %v190, %v191
    %v193 = vrot.slane %v192, 1
    %v194 = vadd.f32 %v192, %v193
    %v195 = vmul.f32 %v194, %v91
    %v196 = vmul.f32 %v187, %v187
    %v197 = vsub.f32 %v195, %v196
    %v198 = vmax.f32 %v197, 0.0
    %v199 = vsub.f32 %v178, %v187
    %v200 = vadd.f32 %v198, 1e-05
    %v201 = vrsqrt.pop %v200
    %v202 = vmul.f32 %v199, %v201
    %v203 = vmul.f32 %v202, %v69
    %v204 = vadd.f32 %v203, %v76
    %v205 = vmax.f32 %v204, 0.0
    %206 = vmatprep.subr.mxu0 0.0
    %207 = vmatpush1.msra.mxu0 %v48
    %208 = vmatprep.subr.mxu0 0.0
    %209 = vmatpush1.msra.mxu0 %v49
    %210 = vmatprep.subr.mxu0 0.0
    %211 = vmatpush1.msra.mxu0 %v50
    %212 = vmatprep.subr.mxu0 0.0
    %213 = vmatpush1.msra.mxu0 %v51
    %214 = vmatprep.subr.mxu0 0.0
    %215 = vmatpush1.msra.mxu0 %v52
    %216 = vmatprep.subr.mxu0 0.0
    %217 = vmatpush1.msra.mxu0 %v53
    %218 = vmatprep.subr.mxu0 0.0
    %219 = vmatpush1.msra.mxu0 %v54
    %220 = vmatprep.subr.mxu0 0.0
    %221 = vmatpush1.msra.mxu0 %v55
    %222 = vmatprep.subr.mxu0 0.0
    %223 = vmatpush1.msra.mxu0 %v56
    %224 = vmatprep.subr.mxu0 0.0
    %225 = vmatpush1.msra.mxu0 %v57
    %226 = vmatprep.subr.mxu0 0.0
    %227 = vmatpush1.msra.mxu0 %v58
    %228 = vmatprep.subr.mxu0 0.0
    %229 = vmatpush1.msra.mxu0 %v59
    %230 = vmatprep.subr.mxu0 0.0
    %231 = vmatpush1.msra.mxu0 %v60
    %232 = vmatprep.subr.mxu0 0.0
    %233 = vmatpush1.msra.mxu0 %v61
    %234 = vmatprep.subr.mxu0 0.0
    %235 = vmatpush1.msra.mxu0 %v62
    %236 = vmatprep.subr.mxu0 0.0
    %237 = vmatpush1.msra.mxu0 %v63
    %238 = vmatprep.subr.mxu0 0.0
    %239 = vmatpush1.msra.mxu0 0.0
    %240 = vmatprep.subr.mxu0 0.0
    %241 = vmatpush1.msra.mxu0 0.0
    %242 = vmatprep.subr.mxu0 0.0
    %243 = vmatpush1.msra.mxu0 0.0
    %244 = vmatprep.subr.mxu0 0.0
    %245 = vmatpush1.msra.mxu0 0.0
    %246 = vmatprep.subr.mxu0 0.0
    %247 = vmatpush1.msra.mxu0 0.0
    %248 = vmatprep.subr.mxu0 0.0
    %249 = vmatpush1.msra.mxu0 0.0
    %250 = vmatprep.subr.mxu0 0.0
    %251 = vmatpush1.msra.mxu0 0.0
    %252 = vmatprep.subr.mxu0 0.0
    %253 = vmatpush1.msra.mxu0 0.0
    %254 = vmatprep.subr.mxu0 0.0
    %255 = vmatpush1.msra.mxu0 0.0
    %256 = vmatprep.subr.mxu0 0.0
    %257 = vmatpush1.msra.mxu0 0.0
    %258 = vmatprep.subr.mxu0 0.0
    %259 = vmatpush1.msra.mxu0 0.0
    %260 = vmatprep.subr.mxu0 0.0
    %261 = vmatpush1.msra.mxu0 0.0
    %262 = vmatprep.subr.mxu0 0.0
    %263 = vmatpush1.msra.mxu0 0.0
    %264 = vmatprep.subr.mxu0 0.0
    %265 = vmatpush1.msra.mxu0 0.0
    %266 = vmatprep.subr.mxu0 0.0
    %267 = vmatpush1.msra.mxu0 0.0
    %268 = vmatprep.subr.mxu0 0.0
    %269 = vmatpush1.msra.mxu0 0.0
    %270 = vmatprep.mubr.f32.mxu0 0.0
    %271 = vmatmul.mubr.f32.gmra.mrb[0].mxu0 %v205
    %v272 = vpop.f32.mrb[0].mxu0
    %v273 = vadd.f32 %v83, %v272
    %v274 = vpop.f32.mrb[0].mxu0
    %275 = vdwg.mxu0
    %v276 = vadd.f32 %v273, %v47
    %v277 = vrot.slane %v276, 4
    %v278 = vadd.f32 %v276, %v277
    %v279 = vrot.slane %v278, 2
    %v280 = vadd.f32 %v278, %v279
    %v281 = vrot.slane %v280, 1
    %v282 = vadd.f32 %v280, %v281
    %v283 = vmul.f32 %v282, %v91
    %v284 = vmul.f32 %v276, %v276
    %v285 = vrot.slane %v284, 4
    %v286 = vadd.f32 %v284, %v285
    %v287 = vrot.slane %v286, 2
    %v288 = vadd.f32 %v286, %v287
    %v289 = vrot.slane %v288, 1
    %v290 = vadd.f32 %v288, %v289
    %v291 = vmul.f32 %v290, %v91
    %v292 = vmul.f32 %v283, %v283
    %v293 = vsub.f32 %v291, %v292
    %v294 = vmax.f32 %v293, 0.0
    %v295 = vsub.f32 %v276, %v283
    %v296 = vadd.f32 %v294, 1e-05
    %v297 = vrsqrt.pop %v296
    %v298 = vmul.f32 %v295, %v297
    %v299 = vmul.f32 %v298, %v69
    %v300 = vadd.f32 %v299, %v76
    %v301 = vmax.f32 %v300, 0.0
    %302 = vmatprep.subr.mxu0 0.0
    %303 = vmatpush1.msra.mxu0 %v48
    %304 = vmatprep.subr.mxu0 0.0
    %305 = vmatpush1.msra.mxu0 %v49
    %306 = vmatprep.subr.mxu0 0.0
    %307 = vmatpush1.msra.mxu0 %v50
    %308 = vmatprep.subr.mxu0 0.0
    %309 = vmatpush1.msra.mxu0 %v51
    %310 = vmatprep.subr.mxu0 0.0
    %311 = vmatpush1.msra.mxu0 %v52
    %312 = vmatprep.subr.mxu0 0.0
    %313 = vmatpush1.msra.mxu0 %v53
    %314 = vmatprep.subr.mxu0 0.0
    %315 = vmatpush1.msra.mxu0 %v54
    %316 = vmatprep.subr.mxu0 0.0
    %317 = vmatpush1.msra.mxu0 %v55
    %318 = vmatprep.subr.mxu0 0.0
    %319 = vmatpush1.msra.mxu0 %v56
    %320 = vmatprep.subr.mxu0 0.0
    %321 = vmatpush1.msra.mxu0 %v57
    %322 = vmatprep.subr.mxu0 0.0
    %323 = vmatpush1.msra.mxu0 %v58
    %324 = vmatprep.subr.mxu0 0.0
    %325 = vmatpush1.msra.mxu0 %v59
    %326 = vmatprep.subr.mxu0 0.0
    %327 = vmatpush1.msra.mxu0 %v60
    %328 = vmatprep.subr.mxu0 0.0
    %329 = vmatpush1.msra.mxu0 %v61
    %330 = vmatprep.subr.mxu0 0.0
    %331 = vmatpush1.msra.mxu0 %v62
    %332 = vmatprep.subr.mxu0 0.0
    %333 = vmatpush1.msra.mxu0 %v63
    %334 = vmatprep.subr.mxu0 0.0
    %335 = vmatpush1.msra.mxu0 0.0
    %336 = vmatprep.subr.mxu0 0.0
    %337 = vmatpush1.msra.mxu0 0.0
    %338 = vmatprep.subr.mxu0 0.0
    %339 = vmatpush1.msra.mxu0 0.0
    %340 = vmatprep.subr.mxu0 0.0
    %341 = vmatpush1.msra.mxu0 0.0
    %342 = vmatprep.subr.mxu0 0.0
    %343 = vmatpush1.msra.mxu0 0.0
    %344 = vmatprep.subr.mxu0 0.0
    %345 = vmatpush1.msra.mxu0 0.0
    %346 = vmatprep.subr.mxu0 0.0
    %347 = vmatpush1.msra.mxu0 0.0
    %348 = vmatprep.subr.mxu0 0.0
    %349 = vmatpush1.msra.mxu0 0.0
    %350 = vmatprep.subr.mxu0 0.0
    %351 = vmatpush1.msra.mxu0 0.0
    %352 = vmatprep.subr.mxu0 0.0
    %353 = vmatpush1.msra.mxu0 0.0
    %354 = vmatprep.subr.mxu0 0.0
    %355 = vmatpush1.msra.mxu0 0.0
    %356 = vmatprep.subr.mxu0 0.0
    %357 = vmatpush1.msra.mxu0 0.0
    %358 = vmatprep.subr.mxu0 0.0
    %359 = vmatpush1.msra.mxu0 0.0
    %360 = vmatprep.subr.mxu0 0.0
    %361 = vmatpush1.msra.mxu0 0.0
    %362 = vmatprep.subr.mxu0 0.0
    %363 = vmatpush1.msra.mxu0 0.0
    %364 = vmatprep.subr.mxu0 0.0
    %365 = vmatpush1.msra.mxu0 0.0
    %366 = vmatprep.mubr.f32.mxu0 0.0
    %367 = vmatmul.mubr.f32.gmra.mrb[0].mxu0 %v301
    %v368 = vpop.f32.mrb[0].mxu0
    %v369 = vadd.f32 %v83, %v368
    %v370 = vpop.f32.mrb[0].mxu0
    %371 = vdwg.mxu0
    %v372 = vrot.slane %v369, 4
    %v373 = vadd.f32 %v369, %v372
    %v374 = vrot.slane %v373, 2
    %v375 = vadd.f32 %v373, %v374
    %v376 = vrot.slane %v375, 1
    %v377 = vadd.f32 %v375, %v376
    %v378 = vmul.f32 %v377, %v91
    %v379 = vmul.f32 %v369, %v369
    %v380 = vrot.slane %v379, 4
    %v381 = vadd.f32 %v379, %v380
    %v382 = vrot.slane %v381, 2
    %v383 = vadd.f32 %v381, %v382
    %v384 = vrot.slane %v383, 1
    %v385 = vadd.f32 %v383, %v384
    %v386 = vmul.f32 %v385, %v91
    %v387 = vmul.f32 %v378, %v378
    %v388 = vsub.f32 %v386, %v387
    %v389 = vmax.f32 %v388, 0.0
    %v390 = vsub.f32 %v369, %v378
    %v391 = vadd.f32 %v389, 1e-05
    %v392 = vrsqrt.pop %v391
    %v393 = vmul.f32 %v390, %v392
    %v394 = vmul.f32 %v393, %v69
    %v395 = vadd.f32 %v394, %v76
    %v396 = vmax.f32 %v395, 0.0
    %397 = vmatprep.subr.mxu0 0.0
    %398 = vmatpush1.msra.mxu0 %v48
    %399 = vmatprep.subr.mxu0 0.0
    %400 = vmatpush1.msra.mxu0 %v49
    %401 = vmatprep.subr.mxu0 0.0
    %402 = vmatpush1.msra.mxu0 %v50
    %403 = vmatprep.subr.mxu0 0.0
    %404 = vmatpush1.msra.mxu0 %v51
    %405 = vmatprep.subr.mxu0 0.0
    %406 = vmatpush1.msra.mxu0 %v52
    %407 = vmatprep.subr.mxu0 0.0
    %408 = vmatpush1.msra.mxu0 %v53
    %409 = vmatprep.subr.mxu0 0.0
    %410 = vmatpush1.msra.mxu0 %v54
    %411 = vmatprep.subr.mxu0 0.0
    %412 = vmatpush1.msra.mxu0 %v55
    %413 = vmatprep.subr.mxu0 0.0
    %414 = vmatpush1.msra.mxu0 %v56
    %415 = vmatprep.subr.mxu0 0.0
    %416 = vmatpush1.msra.mxu0 %v57
    %417 = vmatprep.subr.mxu0 0.0
    %418 = vmatpush1.msra.mxu0 %v58
    %419 = vmatprep.subr.mxu0 0.0
    %420 = vmatpush1.msra.mxu0 %v59
    %421 = vmatprep.subr.mxu0 0.0
    %422 = vmatpush1.msra.mxu0 %v60
    %423 = vmatprep.subr.mxu0 0.0
    %424 = vmatpush1.msra.mxu0 %v61
    %425 = vmatprep.subr.mxu0 0.0
    %426 = vmatpush1.msra.mxu0 %v62
    %427 = vmatprep.subr.mxu0 0.0
    %428 = vmatpush1.msra.mxu0 %v63
    %429 = vmatprep.subr.mxu0 0.0
    %430 = vmatpush1.msra.mxu0 0.0
    %431 = vmatprep.subr.mxu0 0.0
    %432 = vmatpush1.msra.mxu0 0.0
    %433 = vmatprep.subr.mxu0 0.0
    %434 = vmatpush1.msra.mxu0 0.0
    %435 = vmatprep.subr.mxu0 0.0
    %436 = vmatpush1.msra.mxu0 0.0
    %437 = vmatprep.subr.mxu0 0.0
    %438 = vmatpush1.msra.mxu0 0.0
    %439 = vmatprep.subr.mxu0 0.0
    %440 = vmatpush1.msra.mxu0 0.0
    %441 = vmatprep.subr.mxu0 0.0
    %442 = vmatpush1.msra.mxu0 0.0
    %443 = vmatprep.subr.mxu0 0.0
    %444 = vmatpush1.msra.mxu0 0.0
    %445 = vmatprep.subr.mxu0 0.0
    %446 = vmatpush1.msra.mxu0 0.0
    %447 = vmatprep.subr.mxu0 0.0
    %448 = vmatpush1.msra.mxu0 0.0
    %449 = vmatprep.subr.mxu0 0.0
    %450 = vmatpush1.msra.mxu0 0.0
    %451 = vmatprep.subr.mxu0 0.0
    %452 = vmatpush1.msra.mxu0 0.0
    %453 = vmatprep.subr.mxu0 0.0
    %454 = vmatpush1.msra.mxu0 0.0
    %455 = vmatprep.subr.mxu0 0.0
    %456 = vmatpush1.msra.mxu0 0.0
    %457 = vmatprep.subr.mxu0 0.0
    %458 = vmatpush1.msra.mxu0 0.0
    %459 = vmatprep.subr.mxu0 0.0
    %460 = vmatpush1.msra.mxu0 0.0
    %461 = vmatprep.mubr.f32.mxu0 0.0
    %462 = vmatmul.mubr.f32.gmra.mrb[0].mxu0 %v396
    %v463 = vpop.f32.mrb[0].mxu0
    %v464 = vadd.f32 %v83, %v463
    %v465 = vpop.f32.mrb[0].mxu0
    %466 = vdwg.mxu0
    %v467 = vadd.f32 %v464, %v276
    %v468 = vrot.slane %v467, 4
    %v469 = vadd.f32 %v467, %v468
    %v470 = vrot.slane %v469, 2
    %v471 = vadd.f32 %v469, %v470
    %v472 = vrot.slane %v471, 1
    %v473 = vadd.f32 %v471, %v472
    %v474 = vmul.f32 %v473, %v91
    %v475 = vmul.f32 %v467, %v467
    %v476 = vrot.slane %v475, 4
    %v477 = vadd.f32 %v475, %v476
    %v478 = vrot.slane %v477, 2
    %v479 = vadd.f32 %v477, %v478
    %v480 = vrot.slane %v479, 1
    %v481 = vadd.f32 %v479, %v480
    %v482 = vmul.f32 %v481, %v91
    %v483 = vmul.f32 %v474, %v474
    %v484 = vsub.f32 %v482, %v483
    %v485 = vmax.f32 %v484, 0.0
    %v486 = vsub.f32 %v467, %v474
    %v487 = vadd.f32 %v485, 1e-05
    %v488 = vrsqrt.pop %v487
    %v489 = vmul.f32 %v486, %v488
    %v490 = vmul.f32 %v489, %v69
    %v491 = vadd.f32 %v490, %v76
    %v492 = vmax.f32 %v491, 0.0
    %493 = vmatprep.subr.mxu0 0.0
    %494 = vmatpush1.msra.mxu0 %v48
    %495 = vmatprep.subr.mxu0 0.0
    %496 = vmatpush1.msra.mxu0 %v49
    %497 = vmatprep.subr.mxu0 0.0
    %498 = vmatpush1.msra.mxu0 %v50
    %499 = vmatprep.subr.mxu0 0.0
    %500 = vmatpush1.msra.mxu0 %v51
    %501 = vmatprep.subr.mxu0 0.0
    %502 = vmatpush1.msra.mxu0 %v52
    %503 = vmatprep.subr.mxu0 0.0
    %504 = vmatpush1.msra.mxu0 %v53
    %505 = vmatprep.subr.mxu0 0.0
    %506 = vmatpush1.msra.mxu0 %v54
    %507 = vmatprep.subr.mxu0 0.0
    %508 = vmatpush1.msra.mxu0 %v55
    %509 = vmatprep.subr.mxu0 0.0
    %510 = vmatpush1.msra.mxu0 %v56
    %511 = vmatprep.subr.mxu0 0.0
    %512 = vmatpush1.msra.mxu0 %v57
    %513 = vmatprep.subr.mxu0 0.0
    %514 = vmatpush1.msra.mxu0 %v58
    %515 = vmatprep.subr.mxu0 0.0
    %516 = vmatpush1.msra.mxu0 %v59
    %517 = vmatprep.subr.mxu0 0.0
    %518 = vmatpush1.msra.mxu0 %v60
    %519 = vmatprep.subr.mxu0 0.0
    %520 = vmatpush1.msra.mxu0 %v61
    %521 = vmatprep.subr.mxu0 0.0
    %522 = vmatpush1.msra.mxu0 %v62
    %523 = vmatprep.subr.mxu0 0.0
    %524 = vmatpush1.msra.mxu0 %v63
    %525 = vmatprep.subr.mxu0 0.0
    %526 = vmatpush1.msra.mxu0 0.0
    %527 = vmatprep.subr.mxu0 0.0
    %528 = vmatpush1.msra.mxu0 0.0
    %529 = vmatprep.subr.mxu0 0.0
    %530 = vmatpush1.msra.mxu0 0.0
    %531 = vmatprep.subr.mxu0 0.0
    %532 = vmatpush1.msra.mxu0 0.0
    %533 = vmatprep.subr.mxu0 0.0
    %534 = vmatpush1.msra.mxu0 0.0
    %535 = vmatprep.subr.mxu0 0.0
    %536 = vmatpush1.msra.mxu0 0.0
    %537 = vmatprep.subr.mxu0 0.0
    %538 = vmatpush1.msra.mxu0 0.0
    %539 = vmatprep.subr.mxu0 0.0
    %540 = vmatpush1.msra.mxu0 0.0
    %541 = vmatprep.subr.mxu0 0.0
    %542 = vmatpush1.msra.mxu0 0.0
    %543 = vmatprep.subr.mxu0 0.0
    %544 = vmatpush1.msra.mxu0 0.0
    %545 = vmatprep.subr.mxu0 0.0
    %546 = vmatpush1.msra.mxu0 0.0
    %547 = vmatprep.subr.mxu0 0.0
    %548 = vmatpush1.msra.mxu0 0.0
    %549 = vmatprep.subr.mxu0 0.0
    %550 = vmatpush1.msra.mxu0 0.0
    %551 = vmatprep.subr.mxu0 0.0
    %552 = vmatpush1.msra.mxu0 0.0
    %553 = vmatprep.subr.mxu0 0.0
    %554 = vmatpush1.msra.mxu0 0.0
    %555 = vmatprep.subr.mxu0 0.0
    %556 = vmatpush1.msra.mxu0 0.0
    %557 = vmatprep.mubr.f32.mxu0 0.0
    %558 = vmatmul.mubr.f32.gmra.mrb[0].mxu0 %v492
    %v559 = vpop.f32.mrb[0].mxu0
    %v560 = vadd.f32 %v83, %v559
    %v561 = vpop.f32.mrb[0].mxu0
    %562 = vdwg.mxu0
    %v563 = vrot.slane %v560, 4
    %v564 = vadd.f32 %v560, %v563
    %v565 = vrot.slane %v564, 2
    %v566 = vadd.f32 %v564, %v565
    %v567 = vrot.slane %v566, 1
    %v568 = vadd.f32 %v566, %v567
    %v569 = vmul.f32 %v568, %v91
    %v570 = vmul.f32 %v560, %v560
    %v571 = vrot.slane %v570, 4
    %v572 = vadd.f32 %v570, %v571
    %v573 = vrot.slane %v572, 2
    %v574 = vadd.f32 %v572, %v573
    %v575 = vrot.slane %v574, 1
    %v576 = vadd.f32 %v574, %v575
    %v577 = vmul.f32 %v576, %v91
    %v578 = vmul.f32 %v569, %v569
    %v579 = vsub.f32 %v577, %v578
    %v580 = vmax.f32 %v579, 0.0
    %v581 = vsub.f32 %v560, %v569
    %v582 = vadd.f32 %v580, 1e-05
    %v583 = vrsqrt.pop %v582
    %v584 = vmul.f32 %v581, %v583
    %v585 = vmul.f32 %v584, %v69
    %v586 = vadd.f32 %v585, %v76
    %v587 = vmax.f32 %v586, 0.0
    %588 = vmatprep.subr.mxu0 0.0
    %589 = vmatpush1.msra.mxu0 %v48
    %590 = vmatprep.subr.mxu0 0.0
    %591 = vmatpush1.msra.mxu0 %v49
    %592 = vmatprep.subr.mxu0 0.0
    %593 = vmatpush1.msra.mxu0 %v50
    %594 = vmatprep.subr.mxu0 0.0
    %595 = vmatpush1.msra.mxu0 %v51
    %596 = vmatprep.subr.mxu0 0.0
    %597 = vmatpush1.msra.mxu0 %v52
    %598 = vmatprep.subr.mxu0 0.0
    %599 = vmatpush1.msra.mxu0 %v53
    %600 = vmatprep.subr.mxu0 0.0
    %601 = vmatpush1.msra.mxu0 %v54
    %602 = vmatprep.subr.mxu0 0.0
    %603 = vmatpush1.msra.mxu0 %v55
    %604 = vmatprep.subr.mxu0 0.0
    %605 = vmatpush1.msra.mxu0 %v56
    %606 = vmatprep.subr.mxu0 0.0
    %607 = vmatpush1.msra.mxu0 %v57
    %608 = vmatprep.subr.mxu0 0.0
    %609 = vmatpush1.msra.mxu0 %v58
    %610 = vmatprep.subr.mxu0 0.0
    %611 = vmatpush1.msra.mxu0 %v59
    %612 = vmatprep.subr.mxu0 0.0
    %613 = vmatpush1.msra.mxu0 %v60
    %614 = vmatprep.subr.mxu0 0.0
    %615 = vmatpush1.msra.mxu0 %v61
    %616 = vmatprep.subr.mxu0 0.0
    %617 = vmatpush1.msra.mxu0 %v62
    %618 = vmatprep.subr.mxu0 0.0
    %619 = vmatpush1.msra.mxu0 %v63
    %620 = vmatprep.subr.mxu0 0.0
    %621 = vmatpush1.msra.mxu0 0.0
    %622 = vmatprep.subr.mxu0 0.0
    %623 = vmatpush1.msra.mxu0 0.0
    %624 = vmatprep.subr.mxu0 0.0
    %625 = vmatpush1.msra.mxu0 0.0
    %626 = vmatprep.subr.mxu0 0.0
    %627 = vmatpush1.msra.mxu0 0.0
    %628 = vmatprep.subr.mxu0 0.0
    %629 = vmatpush1.msra.mxu0 0.0
    %630 = vmatprep.subr.mxu0 0.0
    %631 = vmatpush1.msra.mxu0 0.0
    %632 = vmatprep.subr.mxu0 0.0
    %633 = vmatpush1.msra.mxu0 0.0
    %634 = vmatprep.subr.mxu0 0.0
    %635 = vmatpush1.msra.mxu0 0.0
    %636 = vmatprep.subr.mxu0 0.0
    %637 = vmatpush1.msra.mxu0 0.0
    %638 = vmatprep.subr.mxu0 0.0
    %639 = vmatpush1.msra.mxu0 0.0
    %640 = vmatprep.subr.mxu0 0.0
    %641 = vmatpush1.msra.mxu0 0.0
    %642 = vmatprep.subr.mxu0 0.0
    %643 = vmatpush1.msra.mxu0 0.0
    %644 = vmatprep.subr.mxu0 0.0
    %645 = vmatpush1.msra.mxu0 0.0
    %646 = vmatprep.subr.mxu0 0.0
    %647 = vmatpush1.msra.mxu0 0.0
    %648 = vmatprep.subr.mxu0 0.0
    %649 = vmatpush1.msra.mxu0 0.0
    %650 = vmatprep.subr.mxu0 0.0
    %651 = vmatpush1.msra.mxu0 0.0
    %652 = vmatprep.mubr.f32.mxu0 0.0
    %653 = vmatmul.mubr.f32.gmra.mrb[0].mxu0 %v587
    %v654 = vpop.f32.mrb[0].mxu0
    %v655 = vadd.f32 %v83, %v654
    %v656 = vpop.f32.mrb[0].mxu0
    %657 = vdwg.mxu0
    %v658 = vadd.f32 %v655, %v467
    %659 = vst [vmem:[#allocation7] sm:$0xff] %v658
    // Predicated region
    $region30: #{tpu_custom_call.1} parent=1 // pred_check
      _
    $region31: #{tpu_custom_call.1} parent=1 // pred_check_branch
      %661 = sbr.rel (0) target = $region33
    $region32: #{tpu_custom_call.1} parent=1 // pred_region
      %s663 = ssub.s32 128, 128
      %664 = vsyncadd [#allocation4], %s663
      %s666 = sshll.u32 [#allocation7], 4
      %s667 = int_to_ptr.vmem [resolvable:$true] %s666
      %669 = dma.vmem_to_hbm [thread:$0]  %s667, 128, %s5, [#allocation4]
    $region33: #{tpu_custom_call.1} parent=1 // pred_fallthru
      _
    // Predicated region
    $region34: #{tpu_custom_call.1} parent=1 // pred_check
      _
    $region35: #{tpu_custom_call.1} parent=1 // pred_check_branch
      %671 = sbr.rel (0) target = $region37
    $region36: #{tpu_custom_call.1} parent=1 // pred_region
      %672 = dma.done [#allocation4], 128
    $region37: #{tpu_custom_call.1} parent=1 // pred_fallthru
      _
    %673 = vsyncpa [#allocation3], 1
    %674 = vsyncpa [#allocation6], 1
    %675 = vsyncpa [#allocation4], 1

</llo_original>
